<compile_context>
chip_gen: v5e
topology: v5e:2x2
jax: 0.10.0
libtpu: 0.0.40
codegen_flags: <defaults>
</compile_context>

<pallas_src>
import functools

import jax
import jax.numpy as jnp
from jax.experimental import pallas as pl
from jax.experimental.pallas import tpu as pltpu


def _round_up(x, m):
    return ((x + m - 1) // m) * m


@functools.lru_cache(maxsize=1)
def _vmem_budget_bytes():
    """Per-core VMEM budget (bytes) allowed for the kernel's working set."""
    try:
        cap = int(pltpu.get_tpu_info().vmem_capacity_bytes)
    except Exception:
        cap = 64 * 1024 * 1024  # conservative fallback: v7x per-TC physical VMEM
    # Leave ~30% headroom for compiler-internal scratch / semaphores.
    return max(32 * 1024 * 1024, int(cap * 0.70))


def _working_set_bytes(tb, th, tk, n_pad):
    """Estimate of the double-buffered VMEM working set for one grid step."""
    bf16, f32, dbuf = 2, 4, 2
    inputs = tb * tk + tk * th + th * n_pad + th + n_pad   # bf16 elements
    outputs = tb * th + tb * n_pad                          # bf16 elements
    scratch = tb * th + tb * n_pad                          # f32 elements
    return dbuf * bf16 * (inputs + outputs) + f32 * scratch


def _pick_tiles(batch, in_dim, h_ae, in_ae, tile_b, tile_h, tile_k):
    """Clamp requested tiles to the (padded) problem dims and the VMEM budget."""
    n_pad = _round_up(in_ae, 128)                       # decoder output, lane-dense
    tb = min(_round_up(tile_b, 16), _round_up(batch, 16))   # bf16: 16-row sublane pack
    th = min(_round_up(tile_h, 128), _round_up(h_ae, 128))
    tk = min(_round_up(tile_k, 128), _round_up(in_dim, 128))

    budget = _vmem_budget_bytes()
    while _working_set_bytes(tb, th, tk, n_pad) > budget:
        if tk > 512:
            tk = _round_up(tk // 2, 128)
        elif th > 512:
            th = _round_up(th // 2, 128)
        elif tb > 64:
            tb = _round_up(tb // 2, 16)
        else:
            break
    return tb, th, tk, n_pad


def _sae_kernel(x_ref, we_ref, wd_ref, be_ref, bd_ref,   # inputs
                h_ref, xp_ref,                           # outputs
                acc_h, acc_xp):                          # f32 VMEM scratch
    """Fused SAE forward for one (inst, batch-tile, h-tile, k-tile) grid step.

    x_ref  : (1, tb, tk)    bf16   activations tile
    we_ref : (1, tk, th)    bf16   W_enc in [K, N] layout
    wd_ref : (1, th, n_pad) bf16   W_dec in [K, N] layout
    be_ref : (1, 1, th)     bf16   encoder bias tile
    bd_ref : (1, 1, n_pad)  bf16   decoder bias
    h_ref  : (1, tb, th)    bf16   hidden output tile (resident across k)
    xp_ref : (1, tb, n_pad) bf16   reconstruction tile (resident across h, k)
    """
    h_idx = pl.program_id(2)
    k_idx = pl.program_id(3)
    nh = pl.num_programs(2)
    nk = pl.num_programs(3)

    # Reset the decoder accumulator at the start of each (inst, batch-tile) pass.
    @pl.when((h_idx == 0) & (k_idx == 0))
    def _init_xp():
        acc_xp[...] = jnp.zeros_like(acc_xp)

    # Reset the encoder accumulator at the start of each h tile's K-reduction.
    @pl.when(k_idx == 0)
    def _init_h():
        acc_h[...] = jnp.zeros_like(acc_h)

    # Encoder partial product: [tb, tk] @ [tk, th] on the MXU, f32 accumulation.
    acc_h[...] += jnp.dot(x_ref[0], we_ref[0], preferred_element_type=jnp.float32)

    @pl.when(k_idx == nk - 1)
    def _finish_h_tile():
        # h = relu(x @ W_enc + b_enc), cast to bf16 (this bf16 value is what the
        # module returns and what feeds the decoder).
        hb = jnp.maximum(acc_h[...] + be_ref[0].astype(jnp.float32), 0.0)
        hb = hb.astype(jnp.bfloat16)
        h_ref[0] = hb

        # Decoder partial product for this h tile: [tb, th] @ [th, n_pad].
        acc_xp[...] += jnp.dot(hb, wd_ref[0], preferred_element_type=jnp.float32)

        @pl.when(h_idx == nh - 1)
        def _finish_xp():
            xp_ref[0] = jnp.maximum(
                acc_xp[...] + bd_ref[0].astype(jnp.float32), 0.0
            ).astype(jnp.bfloat16)


@functools.partial(jax.jit, static_argnames=("tb", "th", "tk", "n_pad"))
def _sae_forward_im(x_im, w_enc_kn, w_dec_kn, b_enc, b_dec, *, tb, th, tk, n_pad):
    """Padded instance-major forward.  x_im: (inst, batch, in_dim) bf16."""
    n_inst, batch, in_dim = x_im.shape
    h_ae = w_enc_kn.shape[2]
    in_ae = w_dec_kn.shape[2]

    b_pad = _round_up(batch, tb)
    k_pad = _round_up(in_dim, tk)
    h_pad = _round_up(h_ae, th)

    # Zero-pad to tile multiples (numerically exact; no-ops when already aligned).
    if (b_pad, k_pad) != (batch, in_dim):
        x_im = jnp.pad(x_im, ((0, 0), (0, b_pad - batch), (0, k_pad - in_dim)))
    if (k_pad, h_pad) != (in_dim, h_ae):
        w_enc_kn = jnp.pad(w_enc_kn, ((0, 0), (0, k_pad - in_dim), (0, h_pad - h_ae)))
    if (h_pad, n_pad) != (h_ae, in_ae):
        w_dec_kn = jnp.pad(w_dec_kn, ((0, 0), (0, h_pad - h_ae), (0, n_pad - in_ae)))
    b_e = jnp.pad(b_enc, ((0, 0), (0, h_pad - h_ae))).reshape(n_inst, 1, h_pad)
    b_d = jnp.pad(b_dec, ((0, 0), (0, n_pad - in_ae))).reshape(n_inst, 1, n_pad)

    grid = (n_inst, b_pad // tb, h_pad // th, k_pad // tk)

    flops = (2 * batch * n_inst * in_dim * h_ae
             + 2 * batch * n_inst * h_ae * in_ae)
    bytes_accessed = 2 * (n_inst * b_pad * k_pad            # x
                          + n_inst * k_pad * h_pad          # W_enc
                          + n_inst * h_pad * n_pad          # W_dec
                          + n_inst * (h_pad + n_pad)        # biases
                          + n_inst * b_pad * (h_pad + n_pad))  # h, x_prime

    # On v7x, if a profile shows one TensorCore idle, swap the leading "parallel"
    # for pltpu.CORE_PARALLEL (or split batch tiles via pl.core_map) — kept as
    # plain "parallel" here since it shards across TCs on current Mosaic.
    h_im, xp_im = pl.pallas_call(
        _sae_kernel,
        out_shape=(
            jax.ShapeDtypeStruct((n_inst, b_pad, h_pad), jnp.bfloat16),
            jax.ShapeDtypeStruct((n_inst, b_pad, n_pad), jnp.bfloat16),
        ),
        grid_spec=pltpu.PrefetchScalarGridSpec(
            num_scalar_prefetch=0,
            grid=grid,
            in_specs=[
                pl.BlockSpec((1, tb, tk), lambda i, b, h, k: (i, b, k)),       # x
                pl.BlockSpec((1, tk, th), lambda i, b, h, k: (i, k, h)),       # W_enc [K,N]
                pl.BlockSpec((1, th, n_pad), lambda i, b, h, k: (i, h, 0)),    # W_dec [K,N]
                pl.BlockSpec((1, 1, th), lambda i, b, h, k: (i, 0, h)),        # b_enc
                pl.BlockSpec((1, 1, n_pad), lambda i, b, h, k: (i, 0, 0)),     # b_dec
            ],
            out_specs=[
                pl.BlockSpec((1, tb, th), lambda i, b, h, k: (i, b, h)),       # h
                pl.BlockSpec((1, tb, n_pad), lambda i, b, h, k: (i, b, 0)),    # x_prime
            ],
            scratch_shapes=[
                pltpu.VMEM((tb, th), jnp.float32),      # encoder accumulator
                pltpu.VMEM((tb, n_pad), jnp.float32),   # decoder accumulator
            ],
        ),
        compiler_params=pltpu.CompilerParams(
            dimension_semantics=("parallel", "parallel", "arbitrary", "arbitrary"),
            vmem_limit_bytes=_vmem_budget_bytes(),
        ),
        cost_estimate=pl.CostEstimate(
            flops=flops, transcendentals=0, bytes_accessed=bytes_accessed),
    )(x_im, w_enc_kn, w_dec_kn, b_e, b_d)

    # Slice off padding (no-op when dims were already aligned).
    h_im = h_im[:, :batch, :h_ae]
    xp_im = xp_im[:, :batch, :in_ae]
    return xp_im, h_im


def sae_forward_instance_major(x_im, w_enc_kn, w_dec_kn, b_enc, b_dec, *,
                               tile_b=512, tile_h=2048, tile_k=2048):
    """Hot-path SAE forward with NO layout round-trips.

    x_im     : [inst, batch, in_dim]  bf16  (in_dim = seq * in_ae, already flat)
    w_enc_kn : [inst, in_dim, h_ae]   bf16  ([K, N] layout)
    w_dec_kn : [inst, h_ae, in_ae]    bf16  ([K, N] layout)
    b_enc    : [inst, h_ae], b_dec : [inst, in_ae]
    returns (x_prime_im [inst, batch, in_ae], h_im [inst, batch, h_ae])
    """
    n_inst, batch, in_dim = x_im.shape
    h_ae = w_enc_kn.shape[2]
    in_ae = w_dec_kn.shape[2]
    tb, th, tk, n_pad = _pick_tiles(batch, in_dim, h_ae, in_ae,
                                    tile_b, tile_h, tile_k)
    return _sae_forward_im(x_im, w_enc_kn, w_dec_kn, b_enc, b_dec,
                           tb=tb, th=th, tk=tk, n_pad=n_pad)


def sae_forward(x, w_enc_kn, w_dec_kn, b_enc, b_dec, *,
                tile_b=512, tile_h=2048, tile_k=2048):
    """PyTorch-convention SAE forward (batch-major in/out).

    x : [batch, inst, seq, in_ae] bf16
    returns (x_prime [batch, inst, in_ae], h [batch, inst, h_ae]).

    NOTE: the transpose into/out of instance-major layout is pure interface
    plumbing; perf-sensitive training loops should keep activations
    instance-major and call sae_forward_instance_major directly.
    """
    batch, n_inst, seq, in_ae = x.shape
    in_dim = seq * in_ae
    x_im = jnp.transpose(x.reshape(batch, n_inst, in_dim), (1, 0, 2))
    xp_im, h_im = sae_forward_instance_major(
        x_im, w_enc_kn, w_dec_kn, b_enc, b_dec,
        tile_b=tile_b, tile_h=tile_h, tile_k=tile_k)
    x_prime = jnp.transpose(xp_im, (1, 0, 2))
    h = jnp.transpose(h_im, (1, 0, 2))
    return x_prime, h


def init_sae_params(key, n_instances, n_input_ae, n_hidden_ae, seq_len):
    """Parameter init mirroring Sae.__init__, stored in kernel-native [K, N] layout."""
    in_dim = n_input_ae * seq_len
    # PyTorch kaiming_normal_ on (inst, h_ae, in_dim) with mode='fan_in',
    # nonlinearity='relu': fan_in = h_ae * in_dim, std = sqrt(2 / fan_in).
    std = (2.0 / (n_hidden_ae * in_dim)) ** 0.5
    w_enc_pt = jax.random.normal(
        key, (n_instances, n_hidden_ae, in_dim), dtype=jnp.float32) * std
    # Kernel layout: W_enc as [K=in_dim, N=h_ae]; W_dec as [K=h_ae, N=in_ae]
    # (the latter is exactly W_enc_pt[..., :in_ae] — no transpose needed).
    w_enc_kn = jnp.transpose(w_enc_pt, (0, 2, 1)).astype(jnp.bfloat16)
    w_dec_kn = w_enc_pt[..., :n_input_ae].astype(jnp.bfloat16)
    b_enc = jnp.zeros((n_instances, n_hidden_ae), dtype=jnp.bfloat16)
    b_dec = jnp.zeros((n_instances, n_input_ae), dtype=jnp.bfloat16)
    return w_enc_kn, w_dec_kn, b_enc, b_dec


if __name__ == "__main__":
    # Small shapes consistent with the module's forward.
    batch, n_instances, seq_len, n_input_ae, n_hidden_ae = 8, 2, 2, 16, 32

    key = jax.random.PRNGKey(0)
    k_param, k_x = jax.random.split(key)

    w_enc_kn, w_dec_kn, b_enc, b_dec = init_sae_params(
        k_param, n_instances, n_input_ae, n_hidden_ae, seq_len)

    x = jax.random.uniform(
        k_x, (batch, n_instances, seq_len, n_input_ae),
        dtype=jnp.float32).astype(jnp.bfloat16)

    x_prime, h = sae_forward(x, w_enc_kn, w_dec_kn, b_enc, b_dec)
    jax.block_until_ready((x_prime, h))

    # Reference check in plain JAX using the PyTorch-layout weights and the
    # PyTorch einsum conventions (f32 accumulation).
    w_enc_pt = jnp.transpose(w_enc_kn, (0, 2, 1))   # (inst, h_ae, in_dim)
    w_dec_pt = jnp.transpose(w_dec_kn, (0, 2, 1))   # (inst, in_ae, h_ae)
    x_flat = x.reshape(batch, n_instances, seq_len * n_input_ae)
    h_ref = jnp.maximum(
        jnp.einsum('bid,ihd->bih', x_flat, w_enc_pt,
                   preferred_element_type=jnp.float32)
        + b_enc.astype(jnp.float32), 0.0).astype(jnp.bfloat16)
    xp_ref = jnp.maximum(
        jnp.einsum('bih,inh->bin', h_ref, w_dec_pt,
                   preferred_element_type=jnp.float32)
        + b_dec.astype(jnp.float32), 0.0).astype(jnp.bfloat16)

    assert h.shape == (batch, n_instances, n_hidden_ae)
    assert x_prime.shape == (batch, n_instances, n_input_ae)
    assert jnp.allclose(h.astype(jnp.float32), h_ref.astype(jnp.float32),
                        atol=2e-2, rtol=2e-2)
    assert jnp.allclose(x_prime.astype(jnp.float32), xp_ref.astype(jnp.float32),
                        atol=2e-2, rtol=2e-2)

    print("KERNEL_OK")
</pallas_src>

<mosaic_0001>
module attributes {stable_mosaic.version = 11 : i64} {
  func.func @_sae_kernel(%arg0: i32, %arg1: i32, %arg2: i32, %arg3: i32, %arg4: memref<1x16x128xbf16, #tpu.memory_space<vmem>>, %arg5: memref<1x128x128xbf16, #tpu.memory_space<vmem>>, %arg6: memref<1x128x128xbf16, #tpu.memory_space<vmem>>, %arg7: memref<1x1x128xbf16, #tpu.memory_space<vmem>>, %arg8: memref<1x1x128xbf16, #tpu.memory_space<vmem>>, %arg9: memref<1x16x128xbf16, #tpu.memory_space<vmem>>, %arg10: memref<1x16x128xbf16, #tpu.memory_space<vmem>>, %arg11: memref<16x128xf32, #tpu.memory_space<vmem>>, %arg12: memref<16x128xf32, #tpu.memory_space<vmem>>) attributes {dimension_semantics = [#tpu.dimension_semantics<parallel>, #tpu.dimension_semantics<parallel>, #tpu.dimension_semantics<arbitrary>, #tpu.dimension_semantics<arbitrary>], iteration_bounds = array<i64: 2, 1, 1, 1>, scalar_prefetch = 0 : i64, scratch_operands = 2 : i64, tpu.core_type = #tpu.core_type<tc>, window_params = [{transform_indices = @transform_0, window_bounds = array<i64: 1, 16, 128>}, {transform_indices = @transform_1, window_bounds = array<i64: 1, 128, 128>}, {transform_indices = @transform_2, window_bounds = array<i64: 1, 128, 128>}, {transform_indices = @transform_3, window_bounds = array<i64: 1, 1, 128>}, {transform_indices = @transform_4, window_bounds = array<i64: 1, 1, 128>}, {transform_indices = @transform_5, window_bounds = array<i64: 1, 16, 128>}, {transform_indices = @transform_6, window_bounds = array<i64: 1, 16, 128>}]} {
    %c0_i32 = arith.constant 0 : i32
    %0 = arith.cmpi eq, %arg2, %c0_i32 : i32
    %c0_i32_0 = arith.constant 0 : i32
    %1 = arith.cmpi eq, %arg3, %c0_i32_0 : i32
    %2 = arith.andi %0, %1 : i1
    %3 = arith.extui %2 : i1 to i32
    %c0_i32_1 = arith.constant 0 : i32
    %4 = arith.cmpi ne, %3, %c0_i32_1 : i32
    scf.if %4 {
      %cst_15 = arith.constant 0.000000e+00 : f32
      %19 = vector.broadcast %cst_15 : f32 to vector<16x128xf32>
      %c0_16 = arith.constant 0 : index
      %c0_17 = arith.constant 0 : index
      %20 = vector.load %arg12[%c0_16, %c0_17] : memref<16x128xf32, #tpu.memory_space<vmem>>, vector<16x128xf32>
      tpu.vector_store %arg12[%c0_16, %c0_17], %19 {strides = array<i32>} : memref<16x128xf32, #tpu.memory_space<vmem>>, vector<16x128xf32>,
    } else {
    }
    %c0_i32_2 = arith.constant 0 : i32
    %5 = arith.cmpi eq, %arg3, %c0_i32_2 : i32
    %6 = arith.extui %5 : i1 to i32
    %c0_i32_3 = arith.constant 0 : i32
    %7 = arith.cmpi ne, %6, %c0_i32_3 : i32
    scf.if %7 {
      %cst_15 = arith.constant 0.000000e+00 : f32
      %19 = vector.broadcast %cst_15 : f32 to vector<16x128xf32>
      %c0_16 = arith.constant 0 : index
      %c0_17 = arith.constant 0 : index
      %20 = vector.load %arg11[%c0_16, %c0_17] : memref<16x128xf32, #tpu.memory_space<vmem>>, vector<16x128xf32>
      tpu.vector_store %arg11[%c0_16, %c0_17], %19 {strides = array<i32>} : memref<16x128xf32, #tpu.memory_space<vmem>>, vector<16x128xf32>,
    } else {
    }
    %c0 = arith.constant 0 : index
    %c0_4 = arith.constant 0 : index
    %8 = vector.load %arg11[%c0, %c0_4] : memref<16x128xf32, #tpu.memory_space<vmem>>, vector<16x128xf32>
    %c0_5 = arith.constant 0 : index
    %c0_6 = arith.constant 0 : index
    %c0_7 = arith.constant 0 : index
    %9 = vector.load %arg4[%c0_5, %c0_6, %c0_7] : memref<1x16x128xbf16, #tpu.memory_space<vmem>>, vector<1x16x128xbf16>
    %10 = vector.shape_cast %9 : vector<1x16x128xbf16> to vector<16x128xbf16>
    %c0_8 = arith.constant 0 : index
    %c0_9 = arith.constant 0 : index
    %c0_10 = arith.constant 0 : index
    %11 = vector.load %arg5[%c0_8, %c0_9, %c0_10] : memref<1x128x128xbf16, #tpu.memory_space<vmem>>, vector<1x128x128xbf16>
    %12 = vector.shape_cast %11 : vector<1x128x128xbf16> to vector<128x128xbf16>
    %cst = arith.constant dense<0.000000e+00> : vector<16x128xf32>
    %13 = tpu.matmul %10, %12, %cst {dimension_numbers = #tpu.dot_dimension_numbers<[1], [0], [0], [1], [0, 0, 1, 1], [], []>} : vector<16x128xbf16>, vector<128x128xbf16>, vector<16x128xf32> -> vector<16x128xf32>
    %14 = arith.addf %8, %13 : vector<16x128xf32>
    %c0_11 = arith.constant 0 : index
    %c0_12 = arith.constant 0 : index
    %15 = vector.load %arg11[%c0_11, %c0_12] : memref<16x128xf32, #tpu.memory_space<vmem>>, vector<16x128xf32>
    tpu.vector_store %arg11[%c0_11, %c0_12], %14 {strides = array<i32>} : memref<16x128xf32, #tpu.memory_space<vmem>>, vector<16x128xf32>,
    %c0_i32_13 = arith.constant 0 : i32
    %16 = arith.cmpi eq, %arg3, %c0_i32_13 : i32
    %17 = arith.extui %16 : i1 to i32
    %c0_i32_14 = arith.constant 0 : i32
    %18 = arith.cmpi ne, %17, %c0_i32_14 : i32
    scf.if %18 {
      %c0_15 = arith.constant 0 : index
      %c0_16 = arith.constant 0 : index
      %19 = vector.load %arg11[%c0_15, %c0_16] : memref<16x128xf32, #tpu.memory_space<vmem>>, vector<16x128xf32>
      %c0_17 = arith.constant 0 : index
      %c0_18 = arith.constant 0 : index
      %c0_19 = arith.constant 0 : index
      %20 = vector.load %arg7[%c0_17, %c0_18, %c0_19] : memref<1x1x128xbf16, #tpu.memory_space<vmem>>, vector<1x1x128xbf16>
      %21 = vector.shape_cast %20 : vector<1x1x128xbf16> to vector<1x128xbf16>
      %22 = arith.extf %21 : vector<1x128xbf16> to vector<1x128xf32>
      %23 = vector.broadcast %22 : vector<1x128xf32> to vector<16x128xf32>
      %24 = arith.addf %19, %23 : vector<16x128xf32>
      %cst_20 = arith.constant 0.000000e+00 : f32
      %25 = vector.broadcast %cst_20 : f32 to vector<16x128xf32>
      %26 = arith.maximumf %24, %25 : vector<16x128xf32>
      %27 = arith.truncf %26 : vector<16x128xf32> to vector<16x128xbf16>
      %c0_21 = arith.constant 0 : index
      %c0_22 = arith.constant 0 : index
      %c0_23 = arith.constant 0 : index
      %28 = vector.load %arg9[%c0_21, %c0_22, %c0_23] : memref<1x16x128xbf16, #tpu.memory_space<vmem>>, vector<1x16x128xbf16>
      %29 = vector.shape_cast %28 : vector<1x16x128xbf16> to vector<16x128xbf16>
      %30 = vector.shape_cast %27 : vector<16x128xbf16> to vector<1x16x128xbf16>
      tpu.vector_store %arg9[%c0_21, %c0_22, %c0_23], %30 {strides = array<i32>} : memref<1x16x128xbf16, #tpu.memory_space<vmem>>, vector<1x16x128xbf16>,
      %c0_24 = arith.constant 0 : index
      %c0_25 = arith.constant 0 : index
      %31 = vector.load %arg12[%c0_24, %c0_25] : memref<16x128xf32, #tpu.memory_space<vmem>>, vector<16x128xf32>
      %c0_26 = arith.constant 0 : index
      %c0_27 = arith.constant 0 : index
      %c0_28 = arith.constant 0 : index
      %32 = vector.load %arg6[%c0_26, %c0_27, %c0_28] : memref<1x128x128xbf16, #tpu.memory_space<vmem>>, vector<1x128x128xbf16>
      %33 = vector.shape_cast %32 : vector<1x128x128xbf16> to vector<128x128xbf16>
      %cst_29 = arith.constant dense<0.000000e+00> : vector<16x128xf32>
      %34 = tpu.matmul %27, %33, %cst_29 {dimension_numbers = #tpu.dot_dimension_numbers<[1], [0], [0], [1], [0, 0, 1, 1], [], []>} : vector<16x128xbf16>, vector<128x128xbf16>, vector<16x128xf32> -> vector<16x128xf32>
      %35 = arith.addf %31, %34 : vector<16x128xf32>
      %c0_30 = arith.constant 0 : index
      %c0_31 = arith.constant 0 : index
      %36 = vector.load %arg12[%c0_30, %c0_31] : memref<16x128xf32, #tpu.memory_space<vmem>>, vector<16x128xf32>
      tpu.vector_store %arg12[%c0_30, %c0_31], %35 {strides = array<i32>} : memref<16x128xf32, #tpu.memory_space<vmem>>, vector<16x128xf32>,
      %c0_i32_32 = arith.constant 0 : i32
      %37 = arith.cmpi eq, %arg2, %c0_i32_32 : i32
      %38 = arith.extui %37 : i1 to i32
      %c0_i32_33 = arith.constant 0 : i32
      %39 = arith.cmpi ne, %38, %c0_i32_33 : i32
      scf.if %39 {
        %c0_34 = arith.constant 0 : index
        %c0_35 = arith.constant 0 : index
        %40 = vector.load %arg12[%c0_34, %c0_35] : memref<16x128xf32, #tpu.memory_space<vmem>>, vector<16x128xf32>
        %c0_36 = arith.constant 0 : index
        %c0_37 = arith.constant 0 : index
        %c0_38 = arith.constant 0 : index
        %41 = vector.load %arg8[%c0_36, %c0_37, %c0_38] : memref<1x1x128xbf16, #tpu.memory_space<vmem>>, vector<1x1x128xbf16>
        %42 = vector.shape_cast %41 : vector<1x1x128xbf16> to vector<1x128xbf16>
        %43 = arith.extf %42 : vector<1x128xbf16> to vector<1x128xf32>
        %44 = vector.broadcast %43 : vector<1x128xf32> to vector<16x128xf32>
        %45 = arith.addf %40, %44 : vector<16x128xf32>
        %cst_39 = arith.constant 0.000000e+00 : f32
        %46 = vector.broadcast %cst_39 : f32 to vector<16x128xf32>
        %47 = arith.maximumf %45, %46 : vector<16x128xf32>
        %48 = arith.truncf %47 : vector<16x128xf32> to vector<16x128xbf16>
        %c0_40 = arith.constant 0 : index
        %c0_41 = arith.constant 0 : index
        %c0_42 = arith.constant 0 : index
        %49 = vector.load %arg10[%c0_40, %c0_41, %c0_42] : memref<1x16x128xbf16, #tpu.memory_space<vmem>>, vector<1x16x128xbf16>
        %50 = vector.shape_cast %49 : vector<1x16x128xbf16> to vector<16x128xbf16>
        %51 = vector.shape_cast %48 : vector<16x128xbf16> to vector<1x16x128xbf16>
        tpu.vector_store %arg10[%c0_40, %c0_41, %c0_42], %51 {strides = array<i32>} : memref<1x16x128xbf16, #tpu.memory_space<vmem>>, vector<1x16x128xbf16>,
      } else {
      }
    } else {
    }
    return
  }
  func.func @transform_0(%arg0: i32, %arg1: i32, %arg2: i32, %arg3: i32) -> (i32, i32, i32) {
    %c0_i32 = arith.constant 0 : i32
    return %arg0, %arg1, %arg3 : i32, i32, i32
  }
  func.func @transform_1(%arg0: i32, %arg1: i32, %arg2: i32, %arg3: i32) -> (i32, i32, i32) {
    %c0_i32 = arith.constant 0 : i32
    return %arg0, %arg3, %arg2 : i32, i32, i32
  }
  func.func @transform_2(%arg0: i32, %arg1: i32, %arg2: i32, %arg3: i32) -> (i32, i32, i32) {
    %c0_i32 = arith.constant 0 : i32
    %c0_i32_0 = arith.constant 0 : i32
    return %arg0, %arg2, %c0_i32 : i32, i32, i32
  }
  func.func @transform_3(%arg0: i32, %arg1: i32, %arg2: i32, %arg3: i32) -> (i32, i32, i32) {
    %c0_i32 = arith.constant 0 : i32
    %c0_i32_0 = arith.constant 0 : i32
    return %arg0, %c0_i32, %arg2 : i32, i32, i32
  }
  func.func @transform_4(%arg0: i32, %arg1: i32, %arg2: i32, %arg3: i32) -> (i32, i32, i32) {
    %c0_i32 = arith.constant 0 : i32
    %c0_i32_0 = arith.constant 0 : i32
    %c0_i32_1 = arith.constant 0 : i32
    return %arg0, %c0_i32, %c0_i32_0 : i32, i32, i32
  }
  func.func @transform_5(%arg0: i32, %arg1: i32, %arg2: i32, %arg3: i32) -> (i32, i32, i32) {
    %c0_i32 = arith.constant 0 : i32
    return %arg0, %arg1, %arg2 : i32, i32, i32
  }
  func.func @transform_6(%arg0: i32, %arg1: i32, %arg2: i32, %arg3: i32) -> (i32, i32, i32) {
    %c0_i32 = arith.constant 0 : i32
    %c0_i32_0 = arith.constant 0 : i32
    return %arg0, %arg1, %c0_i32 : i32, i32, i32
  }
}

</mosaic_0001>

<llo_original>
// kernel: _sae_forward_im.1
$region0: #{_sae_forward_im.1}
  #allocation0 [shape = 'u32[]', space=smem, size = 0x4, offset = 0x4, fixed_abs, tag = 'smem constant byte address 0x4 - core index']
  #allocation1 [shape = 'u32[72,128]{1,0:T(1,128)}', space=vmem, size = 0x9000, scoped, tag = 'internal scratch']
  #allocation2 [shape = 'f32[16,128]{1,0:T(8,128)}', space=vmem, size = 0x2000, scoped, tag = 'scratch operand']
  #allocation3 [shape = 'f32[16,128]{1,0:T(8,128)}', space=vmem, size = 0x2000, scoped, tag = 'scratch operand']
  %s0 = inlined_call_operand.vmem [shape: bf16[2,16,128], index: 0, kind: input, shape index: {}]
  %s1 = inlined_call_operand.vmem [shape: bf16[2,128,128], index: 1, kind: input, shape index: {}]
  %s2 = inlined_call_operand.vmem [shape: bf16[2,128,128], index: 2, kind: input, shape index: {}]
  %s3 = inlined_call_operand.vmem [shape: bf16[2,1,128], index: 3, kind: input, shape index: {}]
  %s4 = inlined_call_operand.vmem [shape: bf16[2,1,128], index: 4, kind: input, shape index: {}]
  %s5 = inlined_call_operand.vmem [shape: bf16[2,16,128], index: 5, kind: output, shape index: {0}]
  %s6 = inlined_call_operand.vmem [shape: bf16[2,16,128], index: 6, kind: output, shape index: {1}]
  %7 = xla_tuple %s5, %s6
  %s8 = sld [smem:[#allocation0]]
  $region77: #{_sae_forward_im.1} parent=0
    _
  %s10 = ssub.s32 1, %s8
  %s11 = scalar_select 0, %s10, %s8
  loop: start=0, step=1, limit=4
  $region2: #{_sae_forward_im.1} parent=0 // loop_pre_header
    _
  $region3: #{_sae_forward_im.1} parent=0 // loop_header
    %s13 = sphi 0, %s17
    %p14 = scmp.ge.s32.totalorder %s13, 4
    %s20 = sphi 0, %s46
    %s21 = sphi 0, %s42
    %s22 = sphi 0, %s38
    %s23 = sphi 0, %s34
    %s24 = sphi 0, %s20
    %s25 = sphi 0, %s21
    %s26 = sphi 0, %s22
    %s27 = sphi 0, %s23
    %s28 = sphi 0, %s24
    %s29 = sphi 0, %s25
    %s30 = sphi 0, %s26
    %s31 = sphi 0, %s27
    %s53 = sphi 0, %s55
    %s56 = sphi 0, %s53
    %s57 = sphi 0, %s56
    %s73 = sphi 0, %s57
    %s83 = sphi 0, %s85
    %s86 = sphi 0, %s83
    %s87 = sphi 0, %s86
    %s103 = sphi 0, %s87
    %s111 = sphi 0, %s113
    %s114 = sphi 0, %s111
    %s115 = sphi 0, %s114
    %s131 = sphi 0, %s115
    %s139 = sphi 0, %s141
    %s142 = sphi 0, %s139
    %s143 = sphi 0, %s142
    %s159 = sphi 0, %s143
    %s165 = sphi 0, %s167
    %s168 = sphi 0, %s165
    %s169 = sphi 0, %s168
    %s185 = sphi 0, %s169
    %s195 = sphi 0, %s197
    %s198 = sphi 0, %s195
    %s199 = sphi 0, %s198
    %s215 = sphi 0, %s199
    %s223 = sphi 0, %s225
    %s226 = sphi 0, %s223
    %s227 = sphi 0, %s226
    %s243 = sphi 0, %s227
  $region4: #{_sae_forward_im.1} parent=0 // loop_header_branch
    %16 = sbr.rel (%p14) target = $region8
  $region5: #{_sae_forward_im.1} parent=0 // loop_body
    %s18 = ssub.s32 %s13, 1
    %s19 = ssub.s32 %s13, 2
    %s32 = sadd.s32 1, %s23
    %p33 = scmp.ge.s32.totalorder %s32, 1
    %s34 = scalar_select %p33, 0, %s32
    %s35 = sadd.s32 1, %s22
    %s36 = scalar_select %p33, %s35, %s22
    %p37 = scmp.ge.s32.totalorder %s36, 1
    %s38 = scalar_select %p37, 0, %s36
    %s39 = sadd.s32 1, %s21
    %s40 = scalar_select %p37, %s39, %s21
    %p41 = scmp.ge.s32.totalorder %s40, 1
    %s42 = scalar_select %p41, 0, %s40
    %s43 = sadd.s32 1, %s20
    %s44 = scalar_select %p41, %s43, %s20
    %p45 = scmp.ge.s32.totalorder %s44, 2
    %s46 = scalar_select %p45, 0, %s44
    %s47 = ssub.s32 %s20, %s46
    %s48 = ssub.s32 %s21, %s42
    %s49 = sor.u32 %s47, %s48
    %s50 = ssub.s32 %s23, %s34
    %s51 = sor.u32 %s49, %s50
    %p52 = scmp.eq.s32.totalorder %s51, 0
    %s54 = sadd.s32 %s53, 1
    %s55 = scalar_select %p52, %s53, %s54
    %p58 = pneg %p52
    %p59 = scmp.eq.s32.totalorder %s13, 1
    %p60 = por %p58, %p59
    %p61 = scmp.ne.s32.totalorder %s53, %s56
    %p62 = scmp.eq.s32.totalorder %s13, 0
    %p63 = por %p61, %p62
    %p64 = scmp.ne.s32.totalorder %s53, %s56
    %p65 = scmp.eq.s32.totalorder %s18, 1
    %p66 = por %p64, %p65
    %p67 = scmp.ne.s32.totalorder %s56, %s57
    %p68 = scmp.eq.s32.totalorder %s18, 0
    %p69 = por %p67, %p68
    %p70 = scmp.ne.s32.totalorder %s56, %s57
    %p71 = scmp.eq.s32.totalorder %s19, 1
    %p72 = por %p70, %p71
    %p74 = scmp.ne.s32.totalorder %s57, %s73
    %p75 = scmp.eq.s32.totalorder %s19, 0
    %p76 = por %p74, %p75
    %s77 = ssub.s32 %s20, %s46
    %s78 = ssub.s32 %s23, %s34
    %s79 = sor.u32 %s77, %s78
    %s80 = ssub.s32 %s22, %s38
    %s81 = sor.u32 %s79, %s80
    %p82 = scmp.eq.s32.totalorder %s81, 0
    %s84 = sadd.s32 %s83, 1
    %s85 = scalar_select %p82, %s83, %s84
    %p88 = pneg %p82
    %p89 = scmp.eq.s32.totalorder %s13, 1
    %p90 = por %p88, %p89
    %p91 = scmp.ne.s32.totalorder %s83, %s86
    %p92 = scmp.eq.s32.totalorder %s13, 0
    %p93 = por %p91, %p92
    %p94 = scmp.ne.s32.totalorder %s83, %s86
    %p95 = scmp.eq.s32.totalorder %s18, 1
    %p96 = por %p94, %p95
    %p97 = scmp.ne.s32.totalorder %s86, %s87
    %p98 = scmp.eq.s32.totalorder %s18, 0
    %p99 = por %p97, %p98
    %p100 = scmp.ne.s32.totalorder %s86, %s87
    %p101 = scmp.eq.s32.totalorder %s19, 1
    %p102 = por %p100, %p101
    %p104 = scmp.ne.s32.totalorder %s87, %s103
    %p105 = scmp.eq.s32.totalorder %s19, 0
    %p106 = por %p104, %p105
    %s107 = ssub.s32 %s20, %s46
    %s108 = ssub.s32 %s22, %s38
    %s109 = sor.u32 %s107, %s108
    %p110 = scmp.eq.s32.totalorder %s109, 0
    %s112 = sadd.s32 %s111, 1
    %s113 = scalar_select %p110, %s111, %s112
    %p116 = pneg %p110
    %p117 = scmp.eq.s32.totalorder %s13, 1
    %p118 = por %p116, %p117
    %p119 = scmp.ne.s32.totalorder %s111, %s114
    %p120 = scmp.eq.s32.totalorder %s13, 0
    %p121 = por %p119, %p120
    %p122 = scmp.ne.s32.totalorder %s111, %s114
    %p123 = scmp.eq.s32.totalorder %s18, 1
    %p124 = por %p122, %p123
    %p125 = scmp.ne.s32.totalorder %s114, %s115
    %p126 = scmp.eq.s32.totalorder %s18, 0
    %p127 = por %p125, %p126
    %p128 = scmp.ne.s32.totalorder %s114, %s115
    %p129 = scmp.eq.s32.totalorder %s19, 1
    %p130 = por %p128, %p129
    %p132 = scmp.ne.s32.totalorder %s115, %s131
    %p133 = scmp.eq.s32.totalorder %s19, 0
    %p134 = por %p132, %p133
    %s135 = ssub.s32 %s20, %s46
    %s136 = ssub.s32 %s22, %s38
    %s137 = sor.u32 %s135, %s136
    %p138 = scmp.eq.s32.totalorder %s137, 0
    %s140 = sadd.s32 %s139, 1
    %s141 = scalar_select %p138, %s139, %s140
    %p144 = pneg %p138
    %p145 = scmp.eq.s32.totalorder %s13, 1
    %p146 = por %p144, %p145
    %p147 = scmp.ne.s32.totalorder %s139, %s142
    %p148 = scmp.eq.s32.totalorder %s13, 0
    %p149 = por %p147, %p148
    %p150 = scmp.ne.s32.totalorder %s139, %s142
    %p151 = scmp.eq.s32.totalorder %s18, 1
    %p152 = por %p150, %p151
    %p153 = scmp.ne.s32.totalorder %s142, %s143
    %p154 = scmp.eq.s32.totalorder %s18, 0
    %p155 = por %p153, %p154
    %p156 = scmp.ne.s32.totalorder %s142, %s143
    %p157 = scmp.eq.s32.totalorder %s19, 1
    %p158 = por %p156, %p157
    %p160 = scmp.ne.s32.totalorder %s143, %s159
    %p161 = scmp.eq.s32.totalorder %s19, 0
    %p162 = por %p160, %p161
    %s163 = ssub.s32 %s20, %s46
    %p164 = scmp.eq.s32.totalorder %s163, 0
    %s166 = sadd.s32 %s165, 1
    %s167 = scalar_select %p164, %s165, %s166
    %p170 = pneg %p164
    %p171 = scmp.eq.s32.totalorder %s13, 1
    %p172 = por %p170, %p171
    %p173 = scmp.ne.s32.totalorder %s165, %s168
    %p174 = scmp.eq.s32.totalorder %s13, 0
    %p175 = por %p173, %p174
    %p176 = scmp.ne.s32.totalorder %s165, %s168
    %p177 = scmp.eq.s32.totalorder %s18, 1
    %p178 = por %p176, %p177
    %p179 = scmp.ne.s32.totalorder %s168, %s169
    %p180 = scmp.eq.s32.totalorder %s18, 0
    %p181 = por %p179, %p180
    %p182 = scmp.ne.s32.totalorder %s168, %s169
    %p183 = scmp.eq.s32.totalorder %s19, 1
    %p184 = por %p182, %p183
    %p186 = scmp.ne.s32.totalorder %s169, %s185
    %p187 = scmp.eq.s32.totalorder %s19, 0
    %p188 = por %p186, %p187
    %s189 = ssub.s32 %s20, %s46
    %s190 = ssub.s32 %s21, %s42
    %s191 = sor.u32 %s189, %s190
    %s192 = ssub.s32 %s22, %s38
    %s193 = sor.u32 %s191, %s192
    %p194 = scmp.eq.s32.totalorder %s193, 0
    %s196 = sadd.s32 %s195, 1
    %s197 = scalar_select %p194, %s195, %s196
    %p200 = pneg %p194
    %p201 = scmp.eq.s32.totalorder %s13, 1
    %p202 = por %p200, %p201
    %p203 = scmp.ne.s32.totalorder %s195, %s198
    %p204 = scmp.eq.s32.totalorder %s13, 0
    %p205 = por %p203, %p204
    %p206 = scmp.ne.s32.totalorder %s195, %s198
    %p207 = scmp.eq.s32.totalorder %s18, 1
    %p208 = por %p206, %p207
    %p209 = scmp.ne.s32.totalorder %s198, %s199
    %p210 = scmp.eq.s32.totalorder %s18, 0
    %p211 = por %p209, %p210
    %p212 = scmp.ne.s32.totalorder %s198, %s199
    %p213 = scmp.eq.s32.totalorder %s19, 1
    %p214 = por %p212, %p213
    %p216 = scmp.ne.s32.totalorder %s199, %s215
    %p217 = scmp.eq.s32.totalorder %s19, 0
    %p218 = por %p216, %p217
    %s219 = ssub.s32 %s20, %s46
    %s220 = ssub.s32 %s21, %s42
    %s221 = sor.u32 %s219, %s220
    %p222 = scmp.eq.s32.totalorder %s221, 0
    %s224 = sadd.s32 %s223, 1
    %s225 = scalar_select %p222, %s223, %s224
    %p228 = pneg %p222
    %p229 = scmp.eq.s32.totalorder %s13, 1
    %p230 = por %p228, %p229
    %p231 = scmp.ne.s32.totalorder %s223, %s226
    %p232 = scmp.eq.s32.totalorder %s13, 0
    %p233 = por %p231, %p232
    %p234 = scmp.ne.s32.totalorder %s223, %s226
    %p235 = scmp.eq.s32.totalorder %s18, 1
    %p236 = por %p234, %p235
    %p237 = scmp.ne.s32.totalorder %s226, %s227
    %p238 = scmp.eq.s32.totalorder %s18, 0
    %p239 = por %p237, %p238
    %p240 = scmp.ne.s32.totalorder %s226, %s227
    %p241 = scmp.eq.s32.totalorder %s19, 1
    %p242 = por %p240, %p241
    %p244 = scmp.ne.s32.totalorder %s227, %s243
    %p245 = scmp.eq.s32.totalorder %s19, 0
    %p246 = por %p244, %p245
    %p247 = scmp.le.s32.totalorder 1, %s13
    %p248 = scmp.lt.s32.totalorder %s13, 3
    %p249 = pnand %p247, %p248
    %p250 = pneg %p249
    // Predicated region
    $region9: #{_sae_forward_im.1} parent=5 // pred_check
      _
    $region10: #{_sae_forward_im.1} parent=5 // pred_check_branch
      %252 = sbr.rel (%p249) target = $region12
    $region11: #{_sae_forward_im.1} parent=5 // pred_region
      %s253 = ssub.s32 %s13, 1
    $region12: #{_sae_forward_im.1} parent=5 // pred_fallthru
      _
    %p254 = scmp.lt.s32.totalorder %s13, 2
    // Predicated region
    $region13: #{_sae_forward_im.1} parent=5 // pred_check
      %p255 = pneg %p254
    $region14: #{_sae_forward_im.1} parent=5 // pred_check_branch
      %257 = sbr.rel (%p255) target = $region16
    $region15: #{_sae_forward_im.1} parent=5 // pred_region
      // Predicated region
      $region17: #{_sae_forward_im.1} parent=15 // pred_check
        %p258 = pneg %p63
      $region18: #{_sae_forward_im.1} parent=15 // pred_check_branch
        %260 = sbr.rel (%p258) target = $region20
      $region19: #{_sae_forward_im.1} parent=15 // pred_region
        %s261 = smul.u32 2, %s21
        %p262 = scmp.lt.s32.totalorder %s20, 1
        %s263 = scalar_select %p262, %s20, 1
        %p264 = scmp.lt.s32.totalorder %s261, 1
        %s265 = scalar_select %p264, %s261, 1
        %p266 = scmp.lt.s32.totalorder %s23, 0
        %s267 = scalar_select %p266, %s23, 0
        %s268 = sadd.s32 %s267, %s265
        %s269 = smul.addr %s263, 2
        %s270 = sadd.s32 %s268, %s269
        %s271 = smul.addr %s270, 4
        %s272 = scalar_lea.vmem %s0, %s271
        %s273 = smul.u32 2, %s21
      $region20: #{_sae_forward_im.1} parent=15 // pred_fallthru
        _
      // Predicated region
      $region21: #{_sae_forward_im.1} parent=15 // pred_check
        %p274 = pneg %p93
      $region22: #{_sae_forward_im.1} parent=15 // pred_check_branch
        %276 = sbr.rel (%p274) target = $region24
      $region23: #{_sae_forward_im.1} parent=15 // pred_region
        %s277 = smul.u32 16, %s23
        %p278 = scmp.lt.s32.totalorder %s20, 1
        %s279 = scalar_select %p278, %s20, 1
        %p280 = scmp.lt.s32.totalorder %s277, 15
        %s281 = scalar_select %p280, %s277, 15
        %p282 = scmp.lt.s32.totalorder %s22, 0
        %s283 = scalar_select %p282, %s22, 0
        %s284 = sadd.s32 %s283, %s281
        %s285 = smul.addr %s279, 16
        %s286 = sadd.s32 %s284, %s285
        %s287 = smul.addr %s286, 4
        %s288 = scalar_lea.vmem %s1, %s287
        %s289 = smul.u32 16, %s23
      $region24: #{_sae_forward_im.1} parent=15 // pred_fallthru
        _
      // Predicated region
      $region25: #{_sae_forward_im.1} parent=15 // pred_check
        %p290 = pneg %p121
      $region26: #{_sae_forward_im.1} parent=15 // pred_check_branch
        %292 = sbr.rel (%p290) target = $region28
      $region27: #{_sae_forward_im.1} parent=15 // pred_region
        %s293 = smul.u32 16, %s22
        %p294 = scmp.lt.s32.totalorder %s20, 1
        %s295 = scalar_select %p294, %s20, 1
        %p296 = scmp.lt.s32.totalorder %s293, 15
        %s297 = scalar_select %p296, %s293, 15
        %s298 = smul.addr %s295, 16
        %s299 = sadd.s32 %s297, %s298
        %s300 = smul.addr %s299, 4
        %s301 = scalar_lea.vmem %s2, %s300
        %s302 = smul.u32 16, %s22
      $region28: #{_sae_forward_im.1} parent=15 // pred_fallthru
        _
      // Predicated region
      $region29: #{_sae_forward_im.1} parent=15 // pred_check
        %p303 = pneg %p149
      $region30: #{_sae_forward_im.1} parent=15 // pred_check_branch
        %305 = sbr.rel (%p303) target = $region32
      $region31: #{_sae_forward_im.1} parent=15 // pred_region
        %p306 = scmp.lt.s32.totalorder %s20, 1
        %s307 = scalar_select %p306, %s20, 1
        %p308 = scmp.lt.s32.totalorder %s22, 0
        %s309 = scalar_select %p308, %s22, 0
        %s310 = sadd.s32 %s309, %s307
        %s311 = scalar_lea.vmem %s3, %s310
      $region32: #{_sae_forward_im.1} parent=15 // pred_fallthru
        _
      // Predicated region
      $region33: #{_sae_forward_im.1} parent=15 // pred_check
        %p312 = pneg %p175
      $region34: #{_sae_forward_im.1} parent=15 // pred_check_branch
        %314 = sbr.rel (%p312) target = $region36
      $region35: #{_sae_forward_im.1} parent=15 // pred_region
        %p315 = scmp.lt.s32.totalorder %s20, 1
        %s316 = scalar_select %p315, %s20, 1
        %s317 = scalar_lea.vmem %s4, %s316
      $region36: #{_sae_forward_im.1} parent=15 // pred_fallthru
        _
    $region16: #{_sae_forward_im.1} parent=5 // pred_fallthru
      _
    %p318 = scmp.le.s32.totalorder 1, %s13
    %p319 = scmp.lt.s32.totalorder %s13, 3
    %p320 = pnand %p318, %p319
    %p321 = pneg %p320
    // Predicated region
    $region37: #{_sae_forward_im.1} parent=5 // pred_check
      _
    $region38: #{_sae_forward_im.1} parent=5 // pred_check_branch
      %323 = sbr.rel (%p320) target = $region40
    $region39: #{_sae_forward_im.1} parent=5 // pred_region
      %s324 = ssub.s32 %s13, 1
      %s325 = smul.u32 2, %s25
      %p326 = scmp.lt.s32.totalorder %s24, 1
      %s327 = scalar_select %p326, %s24, 1
      %p328 = scmp.lt.s32.totalorder %s325, 1
      %s329 = scalar_select %p328, %s325, 1
      %p330 = scmp.lt.s32.totalorder %s27, 0
      %s331 = scalar_select %p330, %s27, 0
      %s332 = sadd.s32 %s331, %s329
      %s333 = smul.addr %s327, 2
      %s334 = sadd.s32 %s332, %s333
      %s335 = smul.addr %s334, 4
      %s336 = scalar_lea.vmem %s0, %s335
      %p337 = pneg %p69
      %p338 = pneg %p66
      %s339 = smul.u32 16, %s27
      %p340 = scmp.lt.s32.totalorder %s24, 1
      %s341 = scalar_select %p340, %s24, 1
      %p342 = scmp.lt.s32.totalorder %s339, 15
      %s343 = scalar_select %p342, %s339, 15
      %p344 = scmp.lt.s32.totalorder %s26, 0
      %s345 = scalar_select %p344, %s26, 0
      %s346 = sadd.s32 %s345, %s343
      %s347 = smul.addr %s341, 16
      %s348 = sadd.s32 %s346, %s347
      %s349 = smul.addr %s348, 4
      %s350 = scalar_lea.vmem %s1, %s349
      %p351 = pneg %p99
      %p352 = pneg %p96
      %s353 = smul.u32 16, %s26
      %p354 = scmp.lt.s32.totalorder %s24, 1
      %s355 = scalar_select %p354, %s24, 1
      %p356 = scmp.lt.s32.totalorder %s353, 15
      %s357 = scalar_select %p356, %s353, 15
      %s358 = smul.addr %s355, 16
      %s359 = sadd.s32 %s357, %s358
      %s360 = smul.addr %s359, 4
      %s361 = scalar_lea.vmem %s2, %s360
      %p362 = pneg %p127
      %p363 = pneg %p124
      %p364 = scmp.lt.s32.totalorder %s24, 1
      %s365 = scalar_select %p364, %s24, 1
      %p366 = scmp.lt.s32.totalorder %s26, 0
      %s367 = scalar_select %p366, %s26, 0
      %s368 = sadd.s32 %s367, %s365
      %s369 = scalar_lea.vmem %s3, %s368
      %p370 = pneg %p155
      %p371 = pneg %p152
      %p372 = scmp.lt.s32.totalorder %s24, 1
      %s373 = scalar_select %p372, %s24, 1
      %s374 = scalar_lea.vmem %s4, %s373
      %p375 = pneg %p181
      %p376 = pneg %p178
      %p377 = pneg %p211
      %p378 = pneg %p208
      %s379 = smul.u32 2, %s25
      %p380 = scmp.lt.s32.totalorder %s24, 1
      %s381 = scalar_select %p380, %s24, 1
      %p382 = scmp.lt.s32.totalorder %s379, 1
      %s383 = scalar_select %p382, %s379, 1
      %p384 = scmp.lt.s32.totalorder %s26, 0
      %s385 = scalar_select %p384, %s26, 0
      %s386 = sadd.s32 %s385, %s383
      %s387 = smul.addr %s381, 2
      %s388 = sadd.s32 %s386, %s387
      %s389 = smul.addr %s388, 4
      %s390 = scalar_lea.vmem %s5, %s389
      %p391 = pneg %p239
      %p392 = pneg %p236
      %s393 = smul.u32 2, %s25
      %p394 = scmp.lt.s32.totalorder %s24, 1
      %s395 = scalar_select %p394, %s24, 1
      %p396 = scmp.lt.s32.totalorder %s393, 1
      %s397 = scalar_select %p396, %s393, 1
      %s398 = smul.addr %s395, 2
      %s399 = sadd.s32 %s397, %s398
      %s400 = smul.addr %s399, 4
      %s401 = scalar_lea.vmem %s6, %s400
      %s402 = smul.u32 2, %s25
      %p403 = scmp.lt.s32.totalorder %s24, 1
      %s404 = scalar_select %p403, %s24, 1
      %p405 = scmp.lt.s32.totalorder %s402, 1
      %s406 = scalar_select %p405, %s402, 1
      %p407 = scmp.lt.s32.totalorder %s27, 0
      %s408 = scalar_select %p407, %s27, 0
      %s409 = sadd.s32 %s408, %s406
      %s410 = smul.addr %s404, 2
      %s411 = sadd.s32 %s409, %s410
      %s412 = smul.addr %s411, 4
      %s413 = scalar_lea.vmem %s0, %s412
      %s414 = smul.u32 2, %s25
      %s415 = smul.u32 16, %s27
      %p416 = scmp.lt.s32.totalorder %s24, 1
      %s417 = scalar_select %p416, %s24, 1
      %p418 = scmp.lt.s32.totalorder %s415, 15
      %s419 = scalar_select %p418, %s415, 15
      %p420 = scmp.lt.s32.totalorder %s26, 0
      %s421 = scalar_select %p420, %s26, 0
      %s422 = sadd.s32 %s421, %s419
      %s423 = smul.addr %s417, 16
      %s424 = sadd.s32 %s422, %s423
      %s425 = smul.addr %s424, 4
      %s426 = scalar_lea.vmem %s1, %s425
      %s427 = smul.u32 16, %s27
      %s428 = smul.u32 16, %s26
      %p429 = scmp.lt.s32.totalorder %s24, 1
      %s430 = scalar_select %p429, %s24, 1
      %p431 = scmp.lt.s32.totalorder %s428, 15
      %s432 = scalar_select %p431, %s428, 15
      %s433 = smul.addr %s430, 16
      %s434 = sadd.s32 %s432, %s433
      %s435 = smul.addr %s434, 4
      %s436 = scalar_lea.vmem %s2, %s435
      %s437 = smul.u32 16, %s26
      %p438 = scmp.lt.s32.totalorder %s24, 1
      %s439 = scalar_select %p438, %s24, 1
      %p440 = scmp.lt.s32.totalorder %s26, 0
      %s441 = scalar_select %p440, %s26, 0
      %s442 = sadd.s32 %s441, %s439
      %s443 = scalar_lea.vmem %s3, %s442
      %p444 = scmp.lt.s32.totalorder %s24, 1
      %s445 = scalar_select %p444, %s24, 1
      %s446 = scalar_lea.vmem %s4, %s445
      %s447 = smul.u32 2, %s25
      %p448 = scmp.lt.s32.totalorder %s24, 1
      %s449 = scalar_select %p448, %s24, 1
      %p450 = scmp.lt.s32.totalorder %s447, 1
      %s451 = scalar_select %p450, %s447, 1
      %p452 = scmp.lt.s32.totalorder %s26, 0
      %s453 = scalar_select %p452, %s26, 0
      %s454 = sadd.s32 %s453, %s451
      %s455 = smul.addr %s449, 2
      %s456 = sadd.s32 %s454, %s455
      %s457 = smul.addr %s456, 4
      %s458 = scalar_lea.vmem %s5, %s457
      %s459 = smul.u32 2, %s25
      %s460 = smul.u32 2, %s25
      %p461 = scmp.lt.s32.totalorder %s24, 1
      %s462 = scalar_select %p461, %s24, 1
      %p463 = scmp.lt.s32.totalorder %s460, 1
      %s464 = scalar_select %p463, %s460, 1
      %s465 = smul.addr %s462, 2
      %s466 = sadd.s32 %s464, %s465
      %s467 = smul.addr %s466, 4
      %s468 = scalar_lea.vmem %s6, %s467
      %s469 = smul.u32 2, %s25
      %p470 = scmp.eq.s32.totalorder %s26, 0
      %p471 = scmp.eq.s32.totalorder %s27, 0
      %p472 = pnand %p470, %p471
      %p473 = pneg %p472
      // Predicated region
      $region41: #{_sae_forward_im.1} parent=39 // pred_check
        _
      $region42: #{_sae_forward_im.1} parent=39 // pred_check_branch
        %475 = sbr.rel (%p472) target = $region44
      $region43: #{_sae_forward_im.1} parent=39 // pred_region
        %476 = vst [vmem:[#allocation3] sm:$0xff] 0.0
        %477 = vst [vmem:[#allocation3 + $0x8] sm:$0xff] 0.0
      $region44: #{_sae_forward_im.1} parent=39 // pred_fallthru
        _
      // Predicated region
      $region45: #{_sae_forward_im.1} parent=39 // pred_check
        %p478 = pneg %p471
      $region46: #{_sae_forward_im.1} parent=39 // pred_check_branch
        %480 = sbr.rel (%p478) target = $region48
      $region47: #{_sae_forward_im.1} parent=39 // pred_region
        %481 = vst [vmem:[#allocation2] sm:$0xff] 0.0
        %482 = vst [vmem:[#allocation2 + $0x8] sm:$0xff] 0.0
      $region48: #{_sae_forward_im.1} parent=39 // pred_fallthru
        _
      %v483 = vld [vmem:[#allocation2] sm:$0xff]
      %v484 = vld [vmem:[#allocation2 + $0x8] sm:$0xff]
      %v485 = vld [vmem:[%s413] sm:$0xf]
      %v486 = vld [vmem:[%s413 + $0x4] sm:$0xf]
      %v487 = vld [vmem:[%s426] sm:$0xf]
      %v488 = vld [vmem:[%s426 + $0x4] sm:$0xf]
      %v489 = vld [vmem:[%s426 + $0x8] sm:$0xf]
      %v490 = vld [vmem:[%s426 + $0xc] sm:$0xf]
      %v491 = vld [vmem:[%s426 + $0x10] sm:$0xf]
      %v492 = vld [vmem:[%s426 + $0x14] sm:$0xf]
      %v493 = vld [vmem:[%s426 + $0x18] sm:$0xf]
      %v494 = vld [vmem:[%s426 + $0x1c] sm:$0xf]
      %v495 = vld [vmem:[%s426 + $0x20] sm:$0xf]
      %v496 = vld [vmem:[%s426 + $0x24] sm:$0xf]
      %v497 = vld [vmem:[%s426 + $0x28] sm:$0xf]
      %v498 = vld [vmem:[%s426 + $0x2c] sm:$0xf]
      %v499 = vld [vmem:[%s426 + $0x30] sm:$0xf]
      %v500 = vld [vmem:[%s426 + $0x34] sm:$0xf]
      %v501 = vld [vmem:[%s426 + $0x38] sm:$0xf]
      %v502 = vld [vmem:[%s426 + $0x3c] sm:$0xf]
      %v505 = vunpack.c.l.b16 %v485
      %v506 = vunpack.c.l.b16 %v486
      %v507 = vpack.c.b16 %v506, %v505
      %v525 = vunpack.c.l.b16 %v487
      %v526 = vunpack.c.l.b16 %v488
      %v527 = vunpack.c.l.b16 %v489
      %v528 = vunpack.c.l.b16 %v490
      %v529 = vunpack.c.l.b16 %v491
      %v530 = vunpack.c.l.b16 %v492
      %v531 = vunpack.c.l.b16 %v493
      %v532 = vunpack.c.l.b16 %v494
      %v533 = vunpack.c.l.b16 %v495
      %v534 = vunpack.c.l.b16 %v496
      %v535 = vunpack.c.l.b16 %v497
      %v536 = vunpack.c.l.b16 %v498
      %v537 = vunpack.c.l.b16 %v499
      %v538 = vunpack.c.l.b16 %v500
      %v539 = vunpack.c.l.b16 %v501
      %v540 = vunpack.c.l.b16 %v502
      %v541 = vpack.c.b16 %v526, %v525
      %v542 = vpack.c.b16 %v528, %v527
      %v543 = vpack.c.b16 %v530, %v529
      %v544 = vpack.c.b16 %v532, %v531
      %v545 = vpack.c.b16 %v534, %v533
      %v546 = vpack.c.b16 %v536, %v535
      %v547 = vpack.c.b16 %v538, %v537
      %v548 = vpack.c.b16 %v540, %v539
      %557 = vmatpush.bf16.msra.mxu0 %v548
      %558 = vmatpush.bf16.msra.mxu0 %v547
      %559 = vmatpush.bf16.msra.mxu0 %v546
      %560 = vmatpush.bf16.msra.mxu0 %v545
      %561 = vmatpush.bf16.msra.mxu0 %v544
      %562 = vmatpush.bf16.msra.mxu0 %v543
      %563 = vmatpush.bf16.msra.mxu0 %v542
      %564 = vmatpush.bf16.msra.mxu0 %v541
      %565 = vmatmul.bf16.gmra.mxu0 %v507
      %v566 = vpop.f32.mrf.mxu0
      %v567 = vadd.f32 0.0, %v566
      %v568 = vpop.f32.mrf.mxu0
      %v569 = vadd.f32 0.0, %v568
      %570 = vdwg.mxu0
      %v571 = vadd.f32 %v483, %v567
      %v572 = vadd.f32 %v484, %v569
      %573 = vst [vmem:[#allocation2] sm:$0xff] %v571
      %574 = vst [vmem:[#allocation2 + $0x8] sm:$0xff] %v572
      // Predicated region
      $region49: #{_sae_forward_im.1} parent=39 // pred_check
        %p575 = pneg %p471
      $region50: #{_sae_forward_im.1} parent=39 // pred_check_branch
        %577 = sbr.rel (%p575) target = $region52
      $region51: #{_sae_forward_im.1} parent=39 // pred_region
        %v578 = vld [vmem:[#allocation2] sm:$0xff]
        %v579 = vld [vmem:[#allocation2 + $0x8] sm:$0xff]
        %v580 = vld [vmem:[%s443] sm:$0x1]
        %v581 = vunpack.c.l.bf16 %v580
        %v582 = vperm.slane %v581, 0
        %v583 = vadd.f32 %v578, %v582
        %v584 = vadd.f32 %v579, %v582
        %v585 = vmax.f32 %v583, 0.0
        %v586 = vmax.f32 %v584, 0.0
        %v587 = vpack.c.bf16 %v585, %v585
        %v588 = vpack.c.bf16 %v586, %v586
        %589 = vst [vmem:[%s458] sm:$0xf] %v587
        %590 = vst [vmem:[%s458 + $0x4] sm:$0xf] %v588
        %v591 = vld [vmem:[#allocation3] sm:$0xff]
        %v592 = vld [vmem:[#allocation3 + $0x8] sm:$0xff]
        %v593 = vld [vmem:[%s436] sm:$0xf]
        %v594 = vld [vmem:[%s436 + $0x4] sm:$0xf]
        %v595 = vld [vmem:[%s436 + $0x8] sm:$0xf]
        %v596 = vld [vmem:[%s436 + $0xc] sm:$0xf]
        %v597 = vld [vmem:[%s436 + $0x10] sm:$0xf]
        %v598 = vld [vmem:[%s436 + $0x14] sm:$0xf]
        %v599 = vld [vmem:[%s436 + $0x18] sm:$0xf]
        %v600 = vld [vmem:[%s436 + $0x1c] sm:$0xf]
        %v601 = vld [vmem:[%s436 + $0x20] sm:$0xf]
        %v602 = vld [vmem:[%s436 + $0x24] sm:$0xf]
        %v603 = vld [vmem:[%s436 + $0x28] sm:$0xf]
        %v604 = vld [vmem:[%s436 + $0x2c] sm:$0xf]
        %v605 = vld [vmem:[%s436 + $0x30] sm:$0xf]
        %v606 = vld [vmem:[%s436 + $0x34] sm:$0xf]
        %v607 = vld [vmem:[%s436 + $0x38] sm:$0xf]
        %v608 = vld [vmem:[%s436 + $0x3c] sm:$0xf]
        %v611 = vunpack.c.l.b16 %v587
        %v612 = vunpack.c.l.b16 %v588
        %v613 = vpack.c.b16 %v612, %v611
        %v631 = vunpack.c.l.b16 %v593
        %v632 = vunpack.c.l.b16 %v594
        %v633 = vunpack.c.l.b16 %v595
        %v634 = vunpack.c.l.b16 %v596
        %v635 = vunpack.c.l.b16 %v597
        %v636 = vunpack.c.l.b16 %v598
        %v637 = vunpack.c.l.b16 %v599
        %v638 = vunpack.c.l.b16 %v600
        %v639 = vunpack.c.l.b16 %v601
        %v640 = vunpack.c.l.b16 %v602
        %v641 = vunpack.c.l.b16 %v603
        %v642 = vunpack.c.l.b16 %v604
        %v643 = vunpack.c.l.b16 %v605
        %v644 = vunpack.c.l.b16 %v606
        %v645 = vunpack.c.l.b16 %v607
        %v646 = vunpack.c.l.b16 %v608
        %v647 = vpack.c.b16 %v632, %v631
        %v648 = vpack.c.b16 %v634, %v633
        %v649 = vpack.c.b16 %v636, %v635
        %v650 = vpack.c.b16 %v638, %v637
        %v651 = vpack.c.b16 %v640, %v639
        %v652 = vpack.c.b16 %v642, %v641
        %v653 = vpack.c.b16 %v644, %v643
        %v654 = vpack.c.b16 %v646, %v645
        %663 = vmatpush.bf16.msra.mxu0 %v654
        %664 = vmatpush.bf16.msra.mxu0 %v653
        %665 = vmatpush.bf16.msra.mxu0 %v652
        %666 = vmatpush.bf16.msra.mxu0 %v651
        %667 = vmatpush.bf16.msra.mxu0 %v650
        %668 = vmatpush.bf16.msra.mxu0 %v649
        %669 = vmatpush.bf16.msra.mxu0 %v648
        %670 = vmatpush.bf16.msra.mxu0 %v647
        %671 = vmatmul.bf16.gmra.mxu0 %v613
        %v672 = vpop.f32.mrf.mxu0
        %v673 = vadd.f32 0.0, %v672
        %v674 = vpop.f32.mrf.mxu0
        %v675 = vadd.f32 0.0, %v674
        %676 = vdwg.mxu0
        %v677 = vadd.f32 %v591, %v673
        %v678 = vadd.f32 %v592, %v675
        %679 = vst [vmem:[#allocation3] sm:$0xff] %v677
        %680 = vst [vmem:[#allocation3 + $0x8] sm:$0xff] %v678
        // Predicated region
        $region53: #{_sae_forward_im.1} parent=51 // pred_check
          %p681 = pneg %p470
        $region54: #{_sae_forward_im.1} parent=51 // pred_check_branch
          %683 = sbr.rel (%p681) target = $region56
        $region55: #{_sae_forward_im.1} parent=51 // pred_region
          %v684 = vld [vmem:[#allocation3] sm:$0xff]
          %v685 = vld [vmem:[#allocation3 + $0x8] sm:$0xff]
          %v686 = vld [vmem:[%s446] sm:$0x1]
          %v687 = vunpack.c.l.bf16 %v686
          %v688 = vperm.slane %v687, 0
          %v689 = vadd.f32 %v684, %v688
          %v690 = vadd.f32 %v685, %v688
          %v691 = vmax.f32 %v689, 0.0
          %v692 = vmax.f32 %v690, 0.0
          %v693 = vpack.c.bf16 %v691, %v691
          %v694 = vpack.c.bf16 %v692, %v692
          %695 = vst [vmem:[%s468] sm:$0xf] %v693
          %696 = vst [vmem:[%s468 + $0x4] sm:$0xf] %v694
        $region56: #{_sae_forward_im.1} parent=51 // pred_fallthru
          _
      $region52: #{_sae_forward_im.1} parent=39 // pred_fallthru
        _
      %s697 = smul.u32 2, %s25
      %p698 = scmp.lt.s32.totalorder %s24, 1
      %s699 = scalar_select %p698, %s24, 1
      %p700 = scmp.lt.s32.totalorder %s697, 1
      %s701 = scalar_select %p700, %s697, 1
      %p702 = scmp.lt.s32.totalorder %s26, 0
      %s703 = scalar_select %p702, %s26, 0
      %s704 = sadd.s32 %s703, %s701
      %s705 = smul.addr %s699, 2
      %s706 = sadd.s32 %s704, %s705
      %s707 = smul.addr %s706, 4
      %s708 = scalar_lea.vmem %s5, %s707
      %s709 = smul.u32 2, %s25
      %p710 = scmp.lt.s32.totalorder %s24, 1
      %s711 = scalar_select %p710, %s24, 1
      %p712 = scmp.lt.s32.totalorder %s709, 1
      %s713 = scalar_select %p712, %s709, 1
      %s714 = smul.addr %s711, 2
      %s715 = sadd.s32 %s713, %s714
      %s716 = smul.addr %s715, 4
      %s717 = scalar_lea.vmem %s6, %s716
      // Predicated region
      $region57: #{_sae_forward_im.1} parent=39 // pred_check
        %p718 = pneg %p208
      $region58: #{_sae_forward_im.1} parent=39 // pred_check_branch
        %720 = sbr.rel (%p718) target = $region60
      $region59: #{_sae_forward_im.1} parent=39 // pred_region
        %s721 = smul.u32 2, %s25
      $region60: #{_sae_forward_im.1} parent=39 // pred_fallthru
        _
      // Predicated region
      $region61: #{_sae_forward_im.1} parent=39 // pred_check
        %p722 = pneg %p236
      $region62: #{_sae_forward_im.1} parent=39 // pred_check_branch
        %724 = sbr.rel (%p722) target = $region64
      $region63: #{_sae_forward_im.1} parent=39 // pred_region
        %s725 = smul.u32 2, %s25
      $region64: #{_sae_forward_im.1} parent=39 // pred_fallthru
        _
    $region40: #{_sae_forward_im.1} parent=5 // pred_fallthru
      _
    %p726 = scmp.le.s32.totalorder 2, %s13
    // Predicated region
    $region65: #{_sae_forward_im.1} parent=5 // pred_check
      %p727 = pneg %p726
    $region66: #{_sae_forward_im.1} parent=5 // pred_check_branch
      %729 = sbr.rel (%p727) target = $region68
    $region67: #{_sae_forward_im.1} parent=5 // pred_region
      %s730 = ssub.s32 %s13, 2
      // Predicated region
      $region69: #{_sae_forward_im.1} parent=67 // pred_check
        %p731 = pneg %p214
      $region70: #{_sae_forward_im.1} parent=67 // pred_check_branch
        %733 = sbr.rel (%p731) target = $region72
      $region71: #{_sae_forward_im.1} parent=67 // pred_region
        %s734 = smul.u32 2, %s29
        %p735 = scmp.lt.s32.totalorder %s28, 1
        %s736 = scalar_select %p735, %s28, 1
        %p737 = scmp.lt.s32.totalorder %s734, 1
        %s738 = scalar_select %p737, %s734, 1
        %p739 = scmp.lt.s32.totalorder %s30, 0
        %s740 = scalar_select %p739, %s30, 0
        %s741 = sadd.s32 %s740, %s738
        %s742 = smul.addr %s736, 2
        %s743 = sadd.s32 %s741, %s742
        %s744 = smul.addr %s743, 4
        %s745 = scalar_lea.vmem %s5, %s744
      $region72: #{_sae_forward_im.1} parent=67 // pred_fallthru
        _
      // Predicated region
      $region73: #{_sae_forward_im.1} parent=67 // pred_check
        %p746 = pneg %p242
      $region74: #{_sae_forward_im.1} parent=67 // pred_check_branch
        %748 = sbr.rel (%p746) target = $region76
      $region75: #{_sae_forward_im.1} parent=67 // pred_region
        %s749 = smul.u32 2, %s29
        %p750 = scmp.lt.s32.totalorder %s28, 1
        %s751 = scalar_select %p750, %s28, 1
        %p752 = scmp.lt.s32.totalorder %s749, 1
        %s753 = scalar_select %p752, %s749, 1
        %s754 = smul.addr %s751, 2
        %s755 = sadd.s32 %s753, %s754
        %s756 = smul.addr %s755, 4
        %s757 = scalar_lea.vmem %s6, %s756
      $region76: #{_sae_forward_im.1} parent=67 // pred_fallthru
        _
    $region68: #{_sae_forward_im.1} parent=5 // pred_fallthru
      _
  $region6: #{_sae_forward_im.1} parent=0 // loop_footer
    %s17 = sadd.s32 1, %s13
  $region7: #{_sae_forward_im.1} parent=0 // loop_footer_branch
    %12 = sbr.rel target = $region3
  $region8: #{_sae_forward_im.1} parent=0 // loop_exit
    _

</llo_original>
